<compile_context>
chip_gen: v5e
topology: v5e:2x2
jax: 0.10.0
libtpu: 0.0.40
codegen_flags: <defaults>
</compile_context>

<pallas_src>
import jax
import jax.numpy as jnp
from jax.experimental import pallas as pl
from jax.experimental.pallas import tpu as pltpu

D_IN = 259
D_H1 = 256
D_H2 = 256
D_OUT = 1024
TM_MAX = 512  # row-tile size; amortizes ~0.35 us/step overhead, fits all chips


def _generator_kernel(x_ref, w1_ref, b1_ref, w2_ref, b2_ref, w3_ref, b3_ref, o_ref):
    # x_ref: (TM, 259); w*_ref: (in, out); b*_ref: (1, out); o_ref: (TM, 1024)
    x = x_ref[...]
    h = jnp.dot(x, w1_ref[...], preferred_element_type=jnp.float32) + b1_ref[...]
    h = jnp.maximum(h, 0.0)                                    # ReLU (VPU)
    h = jnp.dot(h, w2_ref[...], preferred_element_type=jnp.float32) + b2_ref[...]
    h = jnp.maximum(h, 0.0)                                    # ReLU (VPU)
    y = jnp.dot(h, w3_ref[...], preferred_element_type=jnp.float32) + b3_ref[...]
    o_ref[...] = jnp.tanh(y).astype(o_ref.dtype)               # Tanh (EUP)


def generator_forward(x, w1, b1, w2, b2, w3, b3):
    """x: (..., 259) f32. w_i are PyTorch-layout (out, in); b_i are (out,)."""
    orig_shape = x.shape
    assert orig_shape[-1] == D_IN
    m = 1
    for d in orig_shape[:-1]:
        m *= d
    x2d = x.reshape(m, D_IN).astype(jnp.float32)

    # Row tile: multiple of 8 (sublane), capped at TM_MAX. No padding copy of x;
    # Pallas masks the ragged last tile's output writes.
    tm = min(TM_MAX, max(8, ((m + 7) // 8) * 8))
    grid = (pl.cdiv(m, tm),)

    # Weights transposed to (in, out) so row-tiles feed the MXU directly;
    # biases as lane-dense (1, out) rows.
    w1t = w1.T.astype(jnp.float32)
    w2t = w2.T.astype(jnp.float32)
    w3t = w3.T.astype(jnp.float32)
    b1r = b1.reshape(1, D_H1).astype(jnp.float32)
    b2r = b2.reshape(1, D_H2).astype(jnp.float32)
    b3r = b3.reshape(1, D_OUT).astype(jnp.float32)

    out = pl.pallas_call(
        _generator_kernel,
        out_shape=jax.ShapeDtypeStruct((m, D_OUT), jnp.float32),
        grid_spec=pltpu.PrefetchScalarGridSpec(
            num_scalar_prefetch=0,
            grid=grid,
            in_specs=[
                pl.BlockSpec((tm, D_IN), lambda i: (i, 0)),      # x row tile
                pl.BlockSpec((D_IN, D_H1), lambda i: (0, 0)),    # W1 (invariant)
                pl.BlockSpec((1, D_H1), lambda i: (0, 0)),       # b1
                pl.BlockSpec((D_H1, D_H2), lambda i: (0, 0)),    # W2
                pl.BlockSpec((1, D_H2), lambda i: (0, 0)),       # b2
                pl.BlockSpec((D_H2, D_OUT), lambda i: (0, 0)),   # W3
                pl.BlockSpec((1, D_OUT), lambda i: (0, 0)),      # b3
            ],
            out_specs=pl.BlockSpec((tm, D_OUT), lambda i: (i, 0)),
        ),
        compiler_params=pltpu.CompilerParams(
            dimension_semantics=("parallel",),    # megacore-shard row tiles
            vmem_limit_bytes=32 * 1024 * 1024,    # safe on v5e/v6e/v7x
        ),
    )(x2d, w1t, b1r, w2t, b2r, w3t, b3r)

    return out.reshape(*orig_shape[:-1], D_OUT)


def init_params(key):
    # Deterministic init mimicking nn.Linear: U(-1/sqrt(fan_in), 1/sqrt(fan_in)).
    def linear_init(k, out_f, in_f):
        kw, kb = jax.random.split(k)
        bound = 1.0 / jnp.sqrt(jnp.float32(in_f))
        w = jax.random.uniform(kw, (out_f, in_f), jnp.float32, -bound, bound)
        b = jax.random.uniform(kb, (out_f,), jnp.float32, -bound, bound)
        return w, b

    k1, k2, k3 = jax.random.split(key, 3)
    w1, b1 = linear_init(k1, D_H1, D_IN)
    w2, b2 = linear_init(k2, D_H2, D_H1)
    w3, b3 = linear_init(k3, D_OUT, D_H2)
    return w1, b1, w2, b2, w3, b3


if __name__ == "__main__":
    key = jax.random.PRNGKey(0)
    k_x, k_p = jax.random.split(key)

    batch, seq = 2, 8
    x = jax.random.normal(k_x, (batch, seq, D_IN), jnp.float32)
    w1, b1, w2, b2, w3, b3 = init_params(k_p)

    y = generator_forward(x, w1, b1, w2, b2, w3, b3)
    y = jax.block_until_ready(y)

    # Pure-JAX reference (full-precision matmuls).
    hp = jax.lax.Precision.HIGHEST
    h = jnp.maximum(jnp.dot(x, w1.T, precision=hp) + b1, 0.0)
    h = jnp.maximum(jnp.dot(h, w2.T, precision=hp) + b2, 0.0)
    ref = jnp.tanh(jnp.dot(h, w3.T, precision=hp) + b3)

    assert y.shape == (batch, seq, D_OUT)
    assert jnp.allclose(y, ref, atol=1e-4, rtol=1e-4)
    assert bool(jnp.all(jnp.isfinite(y)))

    print("KERNEL_OK")
</pallas_src>

<mosaic_0001>
module attributes {stable_mosaic.version = 11 : i64} {
  func.func @_generator_kernel(%arg0: i32, %arg1: memref<16x259xf32, #tpu.memory_space<vmem>>, %arg2: memref<259x256xf32, #tpu.memory_space<vmem>>, %arg3: memref<1x256xf32, #tpu.memory_space<vmem>>, %arg4: memref<256x256xf32, #tpu.memory_space<vmem>>, %arg5: memref<1x256xf32, #tpu.memory_space<vmem>>, %arg6: memref<256x1024xf32, #tpu.memory_space<vmem>>, %arg7: memref<1x1024xf32, #tpu.memory_space<vmem>>, %arg8: memref<16x1024xf32, #tpu.memory_space<vmem>>) attributes {dimension_semantics = [#tpu.dimension_semantics<parallel>], iteration_bounds = array<i64: 1>, scalar_prefetch = 0 : i64, scratch_operands = 0 : i64, tpu.core_type = #tpu.core_type<tc>, window_params = [{transform_indices = @transform_0, window_bounds = array<i64: 16, 259>}, {pipeline_mode = #tpu.pipeline_mode<synchronous>, transform_indices = @transform_1, window_bounds = array<i64: 259, 256>}, {pipeline_mode = #tpu.pipeline_mode<synchronous>, transform_indices = @transform_2, window_bounds = array<i64: 1, 256>}, {pipeline_mode = #tpu.pipeline_mode<synchronous>, transform_indices = @transform_3, window_bounds = array<i64: 256, 256>}, {pipeline_mode = #tpu.pipeline_mode<synchronous>, transform_indices = @transform_4, window_bounds = array<i64: 1, 256>}, {pipeline_mode = #tpu.pipeline_mode<synchronous>, transform_indices = @transform_5, window_bounds = array<i64: 256, 1024>}, {pipeline_mode = #tpu.pipeline_mode<synchronous>, transform_indices = @transform_6, window_bounds = array<i64: 1, 1024>}, {transform_indices = @transform_7, window_bounds = array<i64: 16, 1024>}]} {
    %c0 = arith.constant 0 : index
    %c0_0 = arith.constant 0 : index
    %0 = vector.load %arg1[%c0, %c0_0] : memref<16x259xf32, #tpu.memory_space<vmem>>, vector<16x259xf32>
    %c0_1 = arith.constant 0 : index
    %c0_2 = arith.constant 0 : index
    %1 = vector.load %arg2[%c0_1, %c0_2] : memref<259x256xf32, #tpu.memory_space<vmem>>, vector<259x256xf32>
    %cst = arith.constant dense<0.000000e+00> : vector<16x256xf32>
    %2 = tpu.matmul %0, %1, %cst {dimension_numbers = #tpu.dot_dimension_numbers<[1], [0], [0], [1], [0, 0, 1, 1], [], []>} : vector<16x259xf32>, vector<259x256xf32>, vector<16x256xf32> -> vector<16x256xf32>
    %c0_3 = arith.constant 0 : index
    %c0_4 = arith.constant 0 : index
    %3 = vector.load %arg3[%c0_3, %c0_4] : memref<1x256xf32, #tpu.memory_space<vmem>>, vector<1x256xf32>
    %4 = vector.broadcast %3 : vector<1x256xf32> to vector<16x256xf32>
    %5 = arith.addf %2, %4 : vector<16x256xf32>
    %cst_5 = arith.constant 0.000000e+00 : f32
    %6 = vector.broadcast %cst_5 : f32 to vector<16x256xf32>
    %7 = arith.maximumf %5, %6 : vector<16x256xf32>
    %c0_6 = arith.constant 0 : index
    %c0_7 = arith.constant 0 : index
    %8 = vector.load %arg4[%c0_6, %c0_7] : memref<256x256xf32, #tpu.memory_space<vmem>>, vector<256x256xf32>
    %cst_8 = arith.constant dense<0.000000e+00> : vector<16x256xf32>
    %9 = tpu.matmul %7, %8, %cst_8 {dimension_numbers = #tpu.dot_dimension_numbers<[1], [0], [0], [1], [0, 0, 1, 1], [], []>} : vector<16x256xf32>, vector<256x256xf32>, vector<16x256xf32> -> vector<16x256xf32>
    %c0_9 = arith.constant 0 : index
    %c0_10 = arith.constant 0 : index
    %10 = vector.load %arg5[%c0_9, %c0_10] : memref<1x256xf32, #tpu.memory_space<vmem>>, vector<1x256xf32>
    %11 = vector.broadcast %10 : vector<1x256xf32> to vector<16x256xf32>
    %12 = arith.addf %9, %11 : vector<16x256xf32>
    %cst_11 = arith.constant 0.000000e+00 : f32
    %13 = vector.broadcast %cst_11 : f32 to vector<16x256xf32>
    %14 = arith.maximumf %12, %13 : vector<16x256xf32>
    %c0_12 = arith.constant 0 : index
    %c0_13 = arith.constant 0 : index
    %15 = vector.load %arg6[%c0_12, %c0_13] : memref<256x1024xf32, #tpu.memory_space<vmem>>, vector<256x1024xf32>
    %cst_14 = arith.constant dense<0.000000e+00> : vector<16x1024xf32>
    %16 = tpu.matmul %14, %15, %cst_14 {dimension_numbers = #tpu.dot_dimension_numbers<[1], [0], [0], [1], [0, 0, 1, 1], [], []>} : vector<16x256xf32>, vector<256x1024xf32>, vector<16x1024xf32> -> vector<16x1024xf32>
    %c0_15 = arith.constant 0 : index
    %c0_16 = arith.constant 0 : index
    %17 = vector.load %arg7[%c0_15, %c0_16] : memref<1x1024xf32, #tpu.memory_space<vmem>>, vector<1x1024xf32>
    %18 = vector.broadcast %17 : vector<1x1024xf32> to vector<16x1024xf32>
    %19 = arith.addf %16, %18 : vector<16x1024xf32>
    %20 = math.tanh %19 : vector<16x1024xf32>
    %c0_17 = arith.constant 0 : index
    %c0_18 = arith.constant 0 : index
    %21 = vector.load %arg8[%c0_17, %c0_18] : memref<16x1024xf32, #tpu.memory_space<vmem>>, vector<16x1024xf32>
    tpu.vector_store %arg8[%c0_17, %c0_18], %20 {strides = array<i32>} : memref<16x1024xf32, #tpu.memory_space<vmem>>, vector<16x1024xf32>,
    return
  }
  func.func @transform_0(%arg0: i32) -> (i32, i32) {
    %c0_i32 = arith.constant 0 : i32
    %c0_i32_0 = arith.constant 0 : i32
    return %arg0, %c0_i32 : i32, i32
  }
  func.func @transform_1(%arg0: i32) -> (i32, i32) {
    %c0_i32 = arith.constant 0 : i32
    %c0_i32_0 = arith.constant 0 : i32
    %c0_i32_1 = arith.constant 0 : i32
    return %c0_i32, %c0_i32_0 : i32, i32
  }
  func.func @transform_2(%arg0: i32) -> (i32, i32) {
    %c0_i32 = arith.constant 0 : i32
    %c0_i32_0 = arith.constant 0 : i32
    %c0_i32_1 = arith.constant 0 : i32
    return %c0_i32, %c0_i32_0 : i32, i32
  }
  func.func @transform_3(%arg0: i32) -> (i32, i32) {
    %c0_i32 = arith.constant 0 : i32
    %c0_i32_0 = arith.constant 0 : i32
    %c0_i32_1 = arith.constant 0 : i32
    return %c0_i32, %c0_i32_0 : i32, i32
  }
  func.func @transform_4(%arg0: i32) -> (i32, i32) {
    %c0_i32 = arith.constant 0 : i32
    %c0_i32_0 = arith.constant 0 : i32
    %c0_i32_1 = arith.constant 0 : i32
    return %c0_i32, %c0_i32_0 : i32, i32
  }
  func.func @transform_5(%arg0: i32) -> (i32, i32) {
    %c0_i32 = arith.constant 0 : i32
    %c0_i32_0 = arith.constant 0 : i32
    %c0_i32_1 = arith.constant 0 : i32
    return %c0_i32, %c0_i32_0 : i32, i32
  }
  func.func @transform_6(%arg0: i32) -> (i32, i32) {
    %c0_i32 = arith.constant 0 : i32
    %c0_i32_0 = arith.constant 0 : i32
    %c0_i32_1 = arith.constant 0 : i32
    return %c0_i32, %c0_i32_0 : i32, i32
  }
  func.func @transform_7(%arg0: i32) -> (i32, i32) {
    %c0_i32 = arith.constant 0 : i32
    %c0_i32_0 = arith.constant 0 : i32
    return %arg0, %c0_i32 : i32, i32
  }
}

</mosaic_0001>

<llo_original>
// kernel: tpu_custom_call.1
$region0: #{tpu_custom_call.1}
  #allocation0 [shape = 'u32[]', space=smem, size = 0x4, offset = 0x4, fixed_abs, tag = 'smem constant byte address 0x4 - core index']
  #allocation1 [shape = 'u32[72,128]{1,0:T(1,128)}', space=vmem, size = 0x9000, scoped, tag = 'internal scratch']
  %s0 = inlined_call_operand.hbm [shape: f32[16,259], index: 0, kind: input, shape index: {}]
  %s1 = inlined_call_operand.hbm [shape: f32[259,256], index: 1, kind: input, shape index: {}]
  %s2 = inlined_call_operand.hbm [shape: f32[1,256], index: 2, kind: input, shape index: {}]
  %s3 = inlined_call_operand.hbm [shape: f32[256,256], index: 3, kind: input, shape index: {}]
  %s4 = inlined_call_operand.vmem [shape: f32[1,256], index: 4, kind: input, shape index: {}]
  %s5 = inlined_call_operand.hbm [shape: f32[256,1024], index: 5, kind: input, shape index: {}]
  %s6 = inlined_call_operand.hbm [shape: f32[1,1024], index: 6, kind: input, shape index: {}]
  %s7 = inlined_call_operand.hbm [shape: f32[16,1024], index: 7, kind: output, shape index: {}]
  %s8 = sld [smem:[#allocation0]]
  $region62: #{tpu_custom_call.1} parent=0
    _
  %s10 = ssub.s32 1, %s8
  %s11 = scalar_select 0, %s10, %s8
  $region1: #{tpu_custom_call.1} parent=0
    #allocation2 [shape = 'u8[24576]{0}', space=vmem, size = 0x6000, scoped, tag = 'input window, operand 0, single buffered']
    #allocation3 [shape = 's32[1]{0}', space=sflag, size = 0x4, scoped, tag = 'scoped memory for tpu_custom_call.1']
    #allocation4 [shape = 's32[1]{0}', space=sflag, size = 0x4, scoped, tag = 'scoped memory for tpu_custom_call.1']
    #allocation5 [shape = 'u8[270336]{0}', space=vmem, size = 0x42000, scoped, tag = 'input window, operand 1, single buffered']
    #allocation6 [shape = 's32[1]{0}', space=sflag, size = 0x4, scoped, tag = 'scoped memory for tpu_custom_call.1']
    #allocation7 [shape = 'u8[1024]{0}', space=vmem, size = 0x400, scoped, tag = 'input window, operand 2, single buffered']
    #allocation8 [shape = 'u8[262144]{0}', space=vmem, size = 0x40000, scoped, tag = 'input window, operand 3, single buffered']
    #allocation9 [shape = 's32[1]{0}', space=sflag, size = 0x4, scoped, tag = 'scoped memory for tpu_custom_call.1']
    #allocation10 [shape = 'u8[1048576]{0}', space=vmem, size = 0x100000, scoped, tag = 'input window, operand 5, single buffered']
    #allocation11 [shape = 'u8[4096]{0}', space=vmem, size = 0x1000, scoped, tag = 'input window, operand 6, single buffered']
    #allocation12 [shape = 's32[1]{0}', space=sflag, size = 0x4, scoped, tag = 'scoped memory for tpu_custom_call.1']
    #allocation13 [shape = 'u8[65536]{0}', space=vmem, size = 0x10000, scoped, tag = 'output window, operand 0, single buffered']
    %12 = vsyncpa [#allocation3], 0
    %13 = vsyncpa [#allocation6], 0
    %14 = vsyncpa [#allocation9], 0
    %15 = vsyncpa [#allocation12], 0
    %16 = vsyncpa [#allocation4], 0
    // Predicated region
    $region2: #{tpu_custom_call.1} parent=1 // pred_check
      _
    $region3: #{tpu_custom_call.1} parent=1 // pred_check_branch
      %18 = sbr.rel (0) target = $region5
    $region4: #{tpu_custom_call.1} parent=1 // pred_region
      %20 = vsyncadd [#allocation3], 0
      %s21 = sshll.u32 %s0, 4
      %s22 = int_to_ptr.hbm [resolvable:$true] %s21
      %s23 = sshll.u32 [#allocation2], 4
      %s24 = int_to_ptr.vmem [resolvable:$true] %s23
      %29 = dma.hbm_to_vmem [thread:$0]  %s22, 768, %s24, [#allocation3], 384, 384, 24
    $region5: #{tpu_custom_call.1} parent=1 // pred_fallthru
      _
    // Predicated region
    $region6: #{tpu_custom_call.1} parent=1 // pred_check
      _
    $region7: #{tpu_custom_call.1} parent=1 // pred_check_branch
      %31 = sbr.rel (0) target = $region9
    $region8: #{tpu_custom_call.1} parent=1 // pred_region
      %33 = vsyncadd [#allocation6], 0
      %s34 = sshll.u32 %s1, 4
      %s35 = int_to_ptr.hbm [resolvable:$true] %s34
      %s36 = sshll.u32 [#allocation5], 4
      %s37 = int_to_ptr.vmem [resolvable:$true] %s36
      %42 = dma.hbm_to_vmem [thread:$0]  %s35, 8448, %s37, [#allocation6], 256, 256, 16
    $region9: #{tpu_custom_call.1} parent=1 // pred_fallthru
      _
    // Predicated region
    $region10: #{tpu_custom_call.1} parent=1 // pred_check
      _
    $region11: #{tpu_custom_call.1} parent=1 // pred_check_branch
      %44 = sbr.rel (0) target = $region13
    $region12: #{tpu_custom_call.1} parent=1 // pred_region
      %46 = vsyncadd [#allocation6], 0
      %s48 = sshll.u32 %s2, 4
      %s49 = int_to_ptr.hbm [resolvable:$true] %s48
      %s50 = sshll.u32 [#allocation7], 4
      %s51 = int_to_ptr.vmem [resolvable:$true] %s50
      %53 = dma.hbm_to_vmem [thread:$0]  %s49, 32, %s51, [#allocation6]
    $region13: #{tpu_custom_call.1} parent=1 // pred_fallthru
      _
    // Predicated region
    $region14: #{tpu_custom_call.1} parent=1 // pred_check
      _
    $region15: #{tpu_custom_call.1} parent=1 // pred_check_branch
      %55 = sbr.rel (0) target = $region17
    $region16: #{tpu_custom_call.1} parent=1 // pred_region
      %57 = vsyncadd [#allocation9], 0
      %s58 = sshll.u32 %s3, 4
      %s59 = int_to_ptr.hbm [resolvable:$true] %s58
      %s60 = sshll.u32 [#allocation8], 4
      %s61 = int_to_ptr.vmem [resolvable:$true] %s60
      %66 = dma.hbm_to_vmem [thread:$0]  %s59, 8192, %s61, [#allocation9], 256, 256, 16
    $region17: #{tpu_custom_call.1} parent=1 // pred_fallthru
      _
    // Predicated region
    $region18: #{tpu_custom_call.1} parent=1 // pred_check
      _
    $region19: #{tpu_custom_call.1} parent=1 // pred_check_branch
      %68 = sbr.rel (0) target = $region21
    $region20: #{tpu_custom_call.1} parent=1 // pred_region
      _
    $region21: #{tpu_custom_call.1} parent=1 // pred_fallthru
      _
    // Predicated region
    $region22: #{tpu_custom_call.1} parent=1 // pred_check
      _
    $region23: #{tpu_custom_call.1} parent=1 // pred_check_branch
      %70 = sbr.rel (0) target = $region25
    $region24: #{tpu_custom_call.1} parent=1 // pred_region
      %72 = vsyncadd [#allocation9], 0
      %s73 = sshll.u32 %s5, 4
      %s74 = int_to_ptr.hbm [resolvable:$true] %s73
      %s75 = sshll.u32 [#allocation10], 4
      %s76 = int_to_ptr.vmem [resolvable:$true] %s75
      %81 = dma.hbm_to_vmem [thread:$0]  %s74, 32768, %s76, [#allocation9], 1024, 1024, 64
    $region25: #{tpu_custom_call.1} parent=1 // pred_fallthru
      _
    // Predicated region
    $region26: #{tpu_custom_call.1} parent=1 // pred_check
      _
    $region27: #{tpu_custom_call.1} parent=1 // pred_check_branch
      %83 = sbr.rel (0) target = $region29
    $region28: #{tpu_custom_call.1} parent=1 // pred_region
      %85 = vsyncadd [#allocation12], 0
      %s87 = sshll.u32 %s6, 4
      %s88 = int_to_ptr.hbm [resolvable:$true] %s87
      %s89 = sshll.u32 [#allocation11], 4
      %s90 = int_to_ptr.vmem [resolvable:$true] %s89
      %92 = dma.hbm_to_vmem [thread:$0]  %s88, 128, %s90, [#allocation12]
    $region29: #{tpu_custom_call.1} parent=1 // pred_fallthru
      _
    // Predicated region
    $region30: #{tpu_custom_call.1} parent=1 // pred_check
      _
    $region31: #{tpu_custom_call.1} parent=1 // pred_check_branch
      %94 = sbr.rel (0) target = $region33
    $region32: #{tpu_custom_call.1} parent=1 // pred_region
      %96 = dma.done [#allocation3], 768
    $region33: #{tpu_custom_call.1} parent=1 // pred_fallthru
      _
    // Predicated region
    $region34: #{tpu_custom_call.1} parent=1 // pred_check
      _
    $region35: #{tpu_custom_call.1} parent=1 // pred_check_branch
      %98 = sbr.rel (0) target = $region37
    $region36: #{tpu_custom_call.1} parent=1 // pred_region
      %100 = dma.done [#allocation6], 8448
    $region37: #{tpu_custom_call.1} parent=1 // pred_fallthru
      _
    // Predicated region
    $region38: #{tpu_custom_call.1} parent=1 // pred_check
      _
    $region39: #{tpu_custom_call.1} parent=1 // pred_check_branch
      %102 = sbr.rel (0) target = $region41
    $region40: #{tpu_custom_call.1} parent=1 // pred_region
      %104 = dma.done [#allocation6], 32
    $region41: #{tpu_custom_call.1} parent=1 // pred_fallthru
      _
    // Predicated region
    $region42: #{tpu_custom_call.1} parent=1 // pred_check
      _
    $region43: #{tpu_custom_call.1} parent=1 // pred_check_branch
      %106 = sbr.rel (0) target = $region45
    $region44: #{tpu_custom_call.1} parent=1 // pred_region
      %108 = dma.done [#allocation9], 8192
    $region45: #{tpu_custom_call.1} parent=1 // pred_fallthru
      _
    // Predicated region
    $region46: #{tpu_custom_call.1} parent=1 // pred_check
      _
    $region47: #{tpu_custom_call.1} parent=1 // pred_check_branch
      %110 = sbr.rel (0) target = $region49
    $region48: #{tpu_custom_call.1} parent=1 // pred_region
      %112 = dma.done [#allocation9], 32768
    $region49: #{tpu_custom_call.1} parent=1 // pred_fallthru
      _
    // Predicated region
    $region50: #{tpu_custom_call.1} parent=1 // pred_check
      _
    $region51: #{tpu_custom_call.1} parent=1 // pred_check_branch
      %114 = sbr.rel (0) target = $region53
    $region52: #{tpu_custom_call.1} parent=1 // pred_region
      %116 = dma.done [#allocation12], 128
    $region53: #{tpu_custom_call.1} parent=1 // pred_fallthru
      _
    %v117 = vld [vmem:[#allocation2] sm:$0xff]
    %v118 = vld [vmem:[#allocation2 + $0x8] sm:$0xff]
    %v119 = vld [vmem:[#allocation2 + $0x10] sm:$0xff]
    %v120 = vld [vmem:[#allocation2 + $0x18] sm:$0xff]
    %v121 = vld [vmem:[#allocation2 + $0x20] sm:$0xff]
    %v122 = vld [vmem:[#allocation2 + $0x28] sm:$0xff]
    %v123 = vld [vmem:[#allocation5] sm:$0xff]
    %v124 = vld [vmem:[#allocation5 + $0x8] sm:$0xff]
    %v125 = vld [vmem:[#allocation5 + $0x10] sm:$0xff]
    %v126 = vld [vmem:[#allocation5 + $0x18] sm:$0xff]
    %v127 = vld [vmem:[#allocation5 + $0x20] sm:$0xff]
    %v128 = vld [vmem:[#allocation5 + $0x28] sm:$0xff]
    %v129 = vld [vmem:[#allocation5 + $0x30] sm:$0xff]
    %v130 = vld [vmem:[#allocation5 + $0x38] sm:$0xff]
    %v131 = vld [vmem:[#allocation5 + $0x40] sm:$0xff]
    %v132 = vld [vmem:[#allocation5 + $0x48] sm:$0xff]
    %v133 = vld [vmem:[#allocation5 + $0x50] sm:$0xff]
    %v134 = vld [vmem:[#allocation5 + $0x58] sm:$0xff]
    %v135 = vld [vmem:[#allocation5 + $0x60] sm:$0xff]
    %v136 = vld [vmem:[#allocation5 + $0x68] sm:$0xff]
    %v137 = vld [vmem:[#allocation5 + $0x70] sm:$0xff]
    %v138 = vld [vmem:[#allocation5 + $0x78] sm:$0xff]
    %v139 = vld [vmem:[#allocation5 + $0x80] sm:$0xff]
    %v140 = vld [vmem:[#allocation5 + $0x88] sm:$0xff]
    %v141 = vld [vmem:[#allocation5 + $0x90] sm:$0xff]
    %v142 = vld [vmem:[#allocation5 + $0x98] sm:$0xff]
    %v143 = vld [vmem:[#allocation5 + $0xa0] sm:$0xff]
    %v144 = vld [vmem:[#allocation5 + $0xa8] sm:$0xff]
    %v145 = vld [vmem:[#allocation5 + $0xb0] sm:$0xff]
    %v146 = vld [vmem:[#allocation5 + $0xb8] sm:$0xff]
    %v147 = vld [vmem:[#allocation5 + $0xc0] sm:$0xff]
    %v148 = vld [vmem:[#allocation5 + $0xc8] sm:$0xff]
    %v149 = vld [vmem:[#allocation5 + $0xd0] sm:$0xff]
    %v150 = vld [vmem:[#allocation5 + $0xd8] sm:$0xff]
    %v151 = vld [vmem:[#allocation5 + $0xe0] sm:$0xff]
    %v152 = vld [vmem:[#allocation5 + $0xe8] sm:$0xff]
    %v153 = vld [vmem:[#allocation5 + $0xf0] sm:$0xff]
    %v154 = vld [vmem:[#allocation5 + $0xf8] sm:$0xff]
    %v155 = vld [vmem:[#allocation5 + $0x100] sm:$0xff]
    %v156 = vld [vmem:[#allocation5 + $0x108] sm:$0xff]
    %v157 = vld [vmem:[#allocation5 + $0x110] sm:$0xff]
    %v158 = vld [vmem:[#allocation5 + $0x118] sm:$0xff]
    %v159 = vld [vmem:[#allocation5 + $0x120] sm:$0xff]
    %v160 = vld [vmem:[#allocation5 + $0x128] sm:$0xff]
    %v161 = vld [vmem:[#allocation5 + $0x130] sm:$0xff]
    %v162 = vld [vmem:[#allocation5 + $0x138] sm:$0xff]
    %v163 = vld [vmem:[#allocation5 + $0x140] sm:$0xff]
    %v164 = vld [vmem:[#allocation5 + $0x148] sm:$0xff]
    %v165 = vld [vmem:[#allocation5 + $0x150] sm:$0xff]
    %v166 = vld [vmem:[#allocation5 + $0x158] sm:$0xff]
    %v167 = vld [vmem:[#allocation5 + $0x160] sm:$0xff]
    %v168 = vld [vmem:[#allocation5 + $0x168] sm:$0xff]
    %v169 = vld [vmem:[#allocation5 + $0x170] sm:$0xff]
    %v170 = vld [vmem:[#allocation5 + $0x178] sm:$0xff]
    %v171 = vld [vmem:[#allocation5 + $0x180] sm:$0xff]
    %v172 = vld [vmem:[#allocation5 + $0x188] sm:$0xff]
    %v173 = vld [vmem:[#allocation5 + $0x190] sm:$0xff]
    %v174 = vld [vmem:[#allocation5 + $0x198] sm:$0xff]
    %v175 = vld [vmem:[#allocation5 + $0x1a0] sm:$0xff]
    %v176 = vld [vmem:[#allocation5 + $0x1a8] sm:$0xff]
    %v177 = vld [vmem:[#allocation5 + $0x1b0] sm:$0xff]
    %v178 = vld [vmem:[#allocation5 + $0x1b8] sm:$0xff]
    %v179 = vld [vmem:[#allocation5 + $0x1c0] sm:$0xff]
    %v180 = vld [vmem:[#allocation5 + $0x1c8] sm:$0xff]
    %v181 = vld [vmem:[#allocation5 + $0x1d0] sm:$0xff]
    %v182 = vld [vmem:[#allocation5 + $0x1d8] sm:$0xff]
    %v183 = vld [vmem:[#allocation5 + $0x1e0] sm:$0xff]
    %v184 = vld [vmem:[#allocation5 + $0x1e8] sm:$0xff]
    %v185 = vld [vmem:[#allocation5 + $0x1f0] sm:$0xff]
    %v186 = vld [vmem:[#allocation5 + $0x1f8] sm:$0xff]
    %v187 = vld [vmem:[#allocation5 + $0x200] sm:$0x7]
    %v188 = vld [vmem:[#allocation5 + $0x208] sm:$0x7]
    %v189 = vld [vmem:[#allocation7] sm:$0x3]
    %v191 = vperm.slane %v189, 0
    %v192 = vperm.slane %v189, 1
    %vm195 = vcmask 23552
    %v197 = vsel %vm195, %v119, 0
    %v200 = vsel %vm195, %v122, 0
    %vm202 = vcmask 1042432
    %v204 = vsel %vm202, %v187, 0
    %v207 = vsel %vm202, %v188, 0
    %209 = vmatpush.msra.mxu0 %v153
    %210 = vmatpush.msra.mxu0 %v151
    %211 = vmatpush.msra.mxu0 %v149
    %212 = vmatpush.msra.mxu0 %v147
    %213 = vmatpush.msra.mxu0 %v145
    %214 = vmatpush.msra.mxu0 %v143
    %215 = vmatpush.msra.mxu0 %v141
    %216 = vmatpush.msra.mxu0 %v139
    %217 = vmatpush.msra.mxu0 %v137
    %218 = vmatpush.msra.mxu0 %v135
    %219 = vmatpush.msra.mxu0 %v133
    %220 = vmatpush.msra.mxu0 %v131
    %221 = vmatpush.msra.mxu0 %v129
    %222 = vmatpush.msra.mxu0 %v127
    %223 = vmatpush.msra.mxu0 %v125
    %224 = vmatpush.msra.mxu0 %v123
    %225 = vmatmul.f32.gmra.mxu0 %v117
    %v226 = vpop.f32.mrf.mxu0
    %v227 = vadd.f32 %v191, %v226
    %228 = vmatmul.f32.gmra.mxu0 %v120
    %v229 = vpop.f32.mrf.mxu0
    %v230 = vadd.f32 %v191, %v229
    %231 = vdwg.mxu0
    %232 = vmatpush.msra.mxu0 %v185
    %233 = vmatpush.msra.mxu0 %v183
    %234 = vmatpush.msra.mxu0 %v181
    %235 = vmatpush.msra.mxu0 %v179
    %236 = vmatpush.msra.mxu0 %v177
    %237 = vmatpush.msra.mxu0 %v175
    %238 = vmatpush.msra.mxu0 %v173
    %239 = vmatpush.msra.mxu0 %v171
    %240 = vmatpush.msra.mxu0 %v169
    %241 = vmatpush.msra.mxu0 %v167
    %242 = vmatpush.msra.mxu0 %v165
    %243 = vmatpush.msra.mxu0 %v163
    %244 = vmatpush.msra.mxu0 %v161
    %245 = vmatpush.msra.mxu0 %v159
    %246 = vmatpush.msra.mxu0 %v157
    %247 = vmatpush.msra.mxu0 %v155
    %248 = vmatmul.f32.gmra.mxu0 %v118
    %v249 = vpop.f32.mrf.mxu0
    %v250 = vadd.f32 %v227, %v249
    %251 = vmatmul.f32.gmra.mxu0 %v121
    %v252 = vpop.f32.mrf.mxu0
    %v253 = vadd.f32 %v230, %v252
    %254 = vdwg.mxu0
    %255 = vmatpush.msra.mxu0 0.0
    %256 = vmatpush.msra.mxu0 0.0
    %257 = vmatpush.msra.mxu0 0.0
    %258 = vmatpush.msra.mxu0 0.0
    %259 = vmatpush.msra.mxu0 0.0
    %260 = vmatpush.msra.mxu0 0.0
    %261 = vmatpush.msra.mxu0 0.0
    %262 = vmatpush.msra.mxu0 0.0
    %263 = vmatpush.msra.mxu0 0.0
    %264 = vmatpush.msra.mxu0 0.0
    %265 = vmatpush.msra.mxu0 0.0
    %266 = vmatpush.msra.mxu0 0.0
    %267 = vmatpush.msra.mxu0 0.0
    %268 = vmatpush.msra.mxu0 0.0
    %269 = vmatpush.msra.mxu0 0.0
    %270 = vmatpush.msra.mxu0 %v204
    %271 = vmatmul.f32.gmra.mxu0 %v197
    %v272 = vpop.f32.mrf.mxu0
    %v273 = vadd.f32 %v250, %v272
    %274 = vmatmul.f32.gmra.mxu0 %v200
    %v275 = vpop.f32.mrf.mxu0
    %v276 = vadd.f32 %v253, %v275
    %277 = vdwg.mxu0
    %278 = vmatpush.msra.mxu0 %v154
    %279 = vmatpush.msra.mxu0 %v152
    %280 = vmatpush.msra.mxu0 %v150
    %281 = vmatpush.msra.mxu0 %v148
    %282 = vmatpush.msra.mxu0 %v146
    %283 = vmatpush.msra.mxu0 %v144
    %284 = vmatpush.msra.mxu0 %v142
    %285 = vmatpush.msra.mxu0 %v140
    %286 = vmatpush.msra.mxu0 %v138
    %287 = vmatpush.msra.mxu0 %v136
    %288 = vmatpush.msra.mxu0 %v134
    %289 = vmatpush.msra.mxu0 %v132
    %290 = vmatpush.msra.mxu0 %v130
    %291 = vmatpush.msra.mxu0 %v128
    %292 = vmatpush.msra.mxu0 %v126
    %293 = vmatpush.msra.mxu0 %v124
    %294 = vmatmul.f32.gmra.mxu0 %v117
    %v295 = vpop.f32.mrf.mxu0
    %v296 = vadd.f32 %v192, %v295
    %297 = vmatmul.f32.gmra.mxu0 %v120
    %v298 = vpop.f32.mrf.mxu0
    %v299 = vadd.f32 %v192, %v298
    %300 = vdwg.mxu0
    %301 = vmatpush.msra.mxu0 %v186
    %302 = vmatpush.msra.mxu0 %v184
    %303 = vmatpush.msra.mxu0 %v182
    %304 = vmatpush.msra.mxu0 %v180
    %305 = vmatpush.msra.mxu0 %v178
    %306 = vmatpush.msra.mxu0 %v176
    %307 = vmatpush.msra.mxu0 %v174
    %308 = vmatpush.msra.mxu0 %v172
    %309 = vmatpush.msra.mxu0 %v170
    %310 = vmatpush.msra.mxu0 %v168
    %311 = vmatpush.msra.mxu0 %v166
    %312 = vmatpush.msra.mxu0 %v164
    %313 = vmatpush.msra.mxu0 %v162
    %314 = vmatpush.msra.mxu0 %v160
    %315 = vmatpush.msra.mxu0 %v158
    %316 = vmatpush.msra.mxu0 %v156
    %317 = vmatmul.f32.gmra.mxu0 %v118
    %v318 = vpop.f32.mrf.mxu0
    %v319 = vadd.f32 %v296, %v318
    %320 = vmatmul.f32.gmra.mxu0 %v121
    %v321 = vpop.f32.mrf.mxu0
    %v322 = vadd.f32 %v299, %v321
    %323 = vdwg.mxu0
    %324 = vmatpush.msra.mxu0 0.0
    %325 = vmatpush.msra.mxu0 0.0
    %326 = vmatpush.msra.mxu0 0.0
    %327 = vmatpush.msra.mxu0 0.0
    %328 = vmatpush.msra.mxu0 0.0
    %329 = vmatpush.msra.mxu0 0.0
    %330 = vmatpush.msra.mxu0 0.0
    %331 = vmatpush.msra.mxu0 0.0
    %332 = vmatpush.msra.mxu0 0.0
    %333 = vmatpush.msra.mxu0 0.0
    %334 = vmatpush.msra.mxu0 0.0
    %335 = vmatpush.msra.mxu0 0.0
    %336 = vmatpush.msra.mxu0 0.0
    %337 = vmatpush.msra.mxu0 0.0
    %338 = vmatpush.msra.mxu0 0.0
    %339 = vmatpush.msra.mxu0 %v207
    %340 = vmatmul.f32.gmra.mxu0 %v197
    %v341 = vpop.f32.mrf.mxu0
    %v342 = vadd.f32 %v319, %v341
    %343 = vmatmul.f32.gmra.mxu0 %v200
    %v344 = vpop.f32.mrf.mxu0
    %v345 = vadd.f32 %v322, %v344
    %346 = vdwg.mxu0
    %v347 = vmax.f32 %v273, 0.0
    %v348 = vmax.f32 %v342, 0.0
    %v349 = vmax.f32 %v276, 0.0
    %v350 = vmax.f32 %v345, 0.0
    %v351 = vld [vmem:[#allocation8] sm:$0xff]
    %v352 = vld [vmem:[#allocation8 + $0x8] sm:$0xff]
    %v353 = vld [vmem:[#allocation8 + $0x10] sm:$0xff]
    %v354 = vld [vmem:[#allocation8 + $0x18] sm:$0xff]
    %v355 = vld [vmem:[#allocation8 + $0x20] sm:$0xff]
    %v356 = vld [vmem:[#allocation8 + $0x28] sm:$0xff]
    %v357 = vld [vmem:[#allocation8 + $0x30] sm:$0xff]
    %v358 = vld [vmem:[#allocation8 + $0x38] sm:$0xff]
    %v359 = vld [vmem:[#allocation8 + $0x40] sm:$0xff]
    %v360 = vld [vmem:[#allocation8 + $0x48] sm:$0xff]
    %v361 = vld [vmem:[#allocation8 + $0x50] sm:$0xff]
    %v362 = vld [vmem:[#allocation8 + $0x58] sm:$0xff]
    %v363 = vld [vmem:[#allocation8 + $0x60] sm:$0xff]
    %v364 = vld [vmem:[#allocation8 + $0x68] sm:$0xff]
    %v365 = vld [vmem:[#allocation8 + $0x70] sm:$0xff]
    %v366 = vld [vmem:[#allocation8 + $0x78] sm:$0xff]
    %v367 = vld [vmem:[#allocation8 + $0x80] sm:$0xff]
    %v368 = vld [vmem:[#allocation8 + $0x88] sm:$0xff]
    %v369 = vld [vmem:[#allocation8 + $0x90] sm:$0xff]
    %v370 = vld [vmem:[#allocation8 + $0x98] sm:$0xff]
    %v371 = vld [vmem:[#allocation8 + $0xa0] sm:$0xff]
    %v372 = vld [vmem:[#allocation8 + $0xa8] sm:$0xff]
    %v373 = vld [vmem:[#allocation8 + $0xb0] sm:$0xff]
    %v374 = vld [vmem:[#allocation8 + $0xb8] sm:$0xff]
    %v375 = vld [vmem:[#allocation8 + $0xc0] sm:$0xff]
    %v376 = vld [vmem:[#allocation8 + $0xc8] sm:$0xff]
    %v377 = vld [vmem:[#allocation8 + $0xd0] sm:$0xff]
    %v378 = vld [vmem:[#allocation8 + $0xd8] sm:$0xff]
    %v379 = vld [vmem:[#allocation8 + $0xe0] sm:$0xff]
    %v380 = vld [vmem:[#allocation8 + $0xe8] sm:$0xff]
    %v381 = vld [vmem:[#allocation8 + $0xf0] sm:$0xff]
    %v382 = vld [vmem:[#allocation8 + $0xf8] sm:$0xff]
    %v383 = vld [vmem:[#allocation8 + $0x100] sm:$0xff]
    %v384 = vld [vmem:[#allocation8 + $0x108] sm:$0xff]
    %v385 = vld [vmem:[#allocation8 + $0x110] sm:$0xff]
    %v386 = vld [vmem:[#allocation8 + $0x118] sm:$0xff]
    %v387 = vld [vmem:[#allocation8 + $0x120] sm:$0xff]
    %v388 = vld [vmem:[#allocation8 + $0x128] sm:$0xff]
    %v389 = vld [vmem:[#allocation8 + $0x130] sm:$0xff]
    %v390 = vld [vmem:[#allocation8 + $0x138] sm:$0xff]
    %v391 = vld [vmem:[#allocation8 + $0x140] sm:$0xff]
    %v392 = vld [vmem:[#allocation8 + $0x148] sm:$0xff]
    %v393 = vld [vmem:[#allocation8 + $0x150] sm:$0xff]
    %v394 = vld [vmem:[#allocation8 + $0x158] sm:$0xff]
    %v395 = vld [vmem:[#allocation8 + $0x160] sm:$0xff]
    %v396 = vld [vmem:[#allocation8 + $0x168] sm:$0xff]
    %v397 = vld [vmem:[#allocation8 + $0x170] sm:$0xff]
    %v398 = vld [vmem:[#allocation8 + $0x178] sm:$0xff]
    %v399 = vld [vmem:[#allocation8 + $0x180] sm:$0xff]
    %v400 = vld [vmem:[#allocation8 + $0x188] sm:$0xff]
    %v401 = vld [vmem:[#allocation8 + $0x190] sm:$0xff]
    %v402 = vld [vmem:[#allocation8 + $0x198] sm:$0xff]
    %v403 = vld [vmem:[#allocation8 + $0x1a0] sm:$0xff]
    %v404 = vld [vmem:[#allocation8 + $0x1a8] sm:$0xff]
    %v405 = vld [vmem:[#allocation8 + $0x1b0] sm:$0xff]
    %v406 = vld [vmem:[#allocation8 + $0x1b8] sm:$0xff]
    %v407 = vld [vmem:[#allocation8 + $0x1c0] sm:$0xff]
    %v408 = vld [vmem:[#allocation8 + $0x1c8] sm:$0xff]
    %v409 = vld [vmem:[#allocation8 + $0x1d0] sm:$0xff]
    %v410 = vld [vmem:[#allocation8 + $0x1d8] sm:$0xff]
    %v411 = vld [vmem:[#allocation8 + $0x1e0] sm:$0xff]
    %v412 = vld [vmem:[#allocation8 + $0x1e8] sm:$0xff]
    %v413 = vld [vmem:[#allocation8 + $0x1f0] sm:$0xff]
    %v414 = vld [vmem:[#allocation8 + $0x1f8] sm:$0xff]
    %v415 = vld [vmem:[%s4] sm:$0x3]
    %v417 = vperm.slane %v415, 0
    %v418 = vperm.slane %v415, 1
    %421 = vmatpush.msra.mxu0 %v381
    %422 = vmatpush.msra.mxu0 %v379
    %423 = vmatpush.msra.mxu0 %v377
    %424 = vmatpush.msra.mxu0 %v375
    %425 = vmatpush.msra.mxu0 %v373
    %426 = vmatpush.msra.mxu0 %v371
    %427 = vmatpush.msra.mxu0 %v369
    %428 = vmatpush.msra.mxu0 %v367
    %429 = vmatpush.msra.mxu0 %v365
    %430 = vmatpush.msra.mxu0 %v363
    %431 = vmatpush.msra.mxu0 %v361
    %432 = vmatpush.msra.mxu0 %v359
    %433 = vmatpush.msra.mxu0 %v357
    %434 = vmatpush.msra.mxu0 %v355
    %435 = vmatpush.msra.mxu0 %v353
    %436 = vmatpush.msra.mxu0 %v351
    %437 = vmatmul.f32.gmra.mxu0 %v347
    %v438 = vpop.f32.mrf.mxu0
    %v439 = vadd.f32 %v417, %v438
    %440 = vmatmul.f32.gmra.mxu0 %v349
    %v441 = vpop.f32.mrf.mxu0
    %v442 = vadd.f32 %v417, %v441
    %443 = vdwg.mxu0
    %444 = vmatpush.msra.mxu0 %v413
    %445 = vmatpush.msra.mxu0 %v411
    %446 = vmatpush.msra.mxu0 %v409
    %447 = vmatpush.msra.mxu0 %v407
    %448 = vmatpush.msra.mxu0 %v405
    %449 = vmatpush.msra.mxu0 %v403
    %450 = vmatpush.msra.mxu0 %v401
    %451 = vmatpush.msra.mxu0 %v399
    %452 = vmatpush.msra.mxu0 %v397
    %453 = vmatpush.msra.mxu0 %v395
    %454 = vmatpush.msra.mxu0 %v393
    %455 = vmatpush.msra.mxu0 %v391
    %456 = vmatpush.msra.mxu0 %v389
    %457 = vmatpush.msra.mxu0 %v387
    %458 = vmatpush.msra.mxu0 %v385
    %459 = vmatpush.msra.mxu0 %v383
    %460 = vmatmul.f32.gmra.mxu0 %v348
    %v461 = vpop.f32.mrf.mxu0
    %v462 = vadd.f32 %v439, %v461
    %463 = vmatmul.f32.gmra.mxu0 %v350
    %v464 = vpop.f32.mrf.mxu0
    %v465 = vadd.f32 %v442, %v464
    %466 = vdwg.mxu0
    %467 = vmatpush.msra.mxu0 %v382
    %468 = vmatpush.msra.mxu0 %v380
    %469 = vmatpush.msra.mxu0 %v378
    %470 = vmatpush.msra.mxu0 %v376
    %471 = vmatpush.msra.mxu0 %v374
    %472 = vmatpush.msra.mxu0 %v372
    %473 = vmatpush.msra.mxu0 %v370
    %474 = vmatpush.msra.mxu0 %v368
    %475 = vmatpush.msra.mxu0 %v366
    %476 = vmatpush.msra.mxu0 %v364
    %477 = vmatpush.msra.mxu0 %v362
    %478 = vmatpush.msra.mxu0 %v360
    %479 = vmatpush.msra.mxu0 %v358
    %480 = vmatpush.msra.mxu0 %v356
    %481 = vmatpush.msra.mxu0 %v354
    %482 = vmatpush.msra.mxu0 %v352
    %483 = vmatmul.f32.gmra.mxu0 %v347
    %v484 = vpop.f32.mrf.mxu0
    %v485 = vadd.f32 %v418, %v484
    %486 = vmatmul.f32.gmra.mxu0 %v349
    %v487 = vpop.f32.mrf.mxu0
    %v488 = vadd.f32 %v418, %v487
    %489 = vdwg.mxu0
    %490 = vmatpush.msra.mxu0 %v414
    %491 = vmatpush.msra.mxu0 %v412
    %492 = vmatpush.msra.mxu0 %v410
    %493 = vmatpush.msra.mxu0 %v408
    %494 = vmatpush.msra.mxu0 %v406
    %495 = vmatpush.msra.mxu0 %v404
    %496 = vmatpush.msra.mxu0 %v402
    %497 = vmatpush.msra.mxu0 %v400
    %498 = vmatpush.msra.mxu0 %v398
    %499 = vmatpush.msra.mxu0 %v396
    %500 = vmatpush.msra.mxu0 %v394
    %501 = vmatpush.msra.mxu0 %v392
    %502 = vmatpush.msra.mxu0 %v390
    %503 = vmatpush.msra.mxu0 %v388
    %504 = vmatpush.msra.mxu0 %v386
    %505 = vmatpush.msra.mxu0 %v384
    %506 = vmatmul.f32.gmra.mxu0 %v348
    %v507 = vpop.f32.mrf.mxu0
    %v508 = vadd.f32 %v485, %v507
    %509 = vmatmul.f32.gmra.mxu0 %v350
    %v510 = vpop.f32.mrf.mxu0
    %v511 = vadd.f32 %v488, %v510
    %512 = vdwg.mxu0
    %v513 = vmax.f32 %v462, 0.0
    %v514 = vmax.f32 %v508, 0.0
    %v515 = vmax.f32 %v465, 0.0
    %v516 = vmax.f32 %v511, 0.0
    %v517 = vld [vmem:[#allocation10] sm:$0xff]
    %v518 = vld [vmem:[#allocation10 + $0x8] sm:$0xff]
    %v519 = vld [vmem:[#allocation10 + $0x10] sm:$0xff]
    %v520 = vld [vmem:[#allocation10 + $0x18] sm:$0xff]
    %v521 = vld [vmem:[#allocation10 + $0x20] sm:$0xff]
    %v522 = vld [vmem:[#allocation10 + $0x28] sm:$0xff]
    %v523 = vld [vmem:[#allocation10 + $0x30] sm:$0xff]
    %v524 = vld [vmem:[#allocation10 + $0x38] sm:$0xff]
    %v525 = vld [vmem:[#allocation10 + $0x40] sm:$0xff]
    %v526 = vld [vmem:[#allocation10 + $0x48] sm:$0xff]
    %v527 = vld [vmem:[#allocation10 + $0x50] sm:$0xff]
    %v528 = vld [vmem:[#allocation10 + $0x58] sm:$0xff]
    %v529 = vld [vmem:[#allocation10 + $0x60] sm:$0xff]
    %v530 = vld [vmem:[#allocation10 + $0x68] sm:$0xff]
    %v531 = vld [vmem:[#allocation10 + $0x70] sm:$0xff]
    %v532 = vld [vmem:[#allocation10 + $0x78] sm:$0xff]
    %v533 = vld [vmem:[#allocation10 + $0x80] sm:$0xff]
    %v534 = vld [vmem:[#allocation10 + $0x88] sm:$0xff]
    %v535 = vld [vmem:[#allocation10 + $0x90] sm:$0xff]
    %v536 = vld [vmem:[#allocation10 + $0x98] sm:$0xff]
    %v537 = vld [vmem:[#allocation10 + $0xa0] sm:$0xff]
    %v538 = vld [vmem:[#allocation10 + $0xa8] sm:$0xff]
    %v539 = vld [vmem:[#allocation10 + $0xb0] sm:$0xff]
    %v540 = vld [vmem:[#allocation10 + $0xb8] sm:$0xff]
    %v541 = vld [vmem:[#allocation10 + $0xc0] sm:$0xff]
    %v542 = vld [vmem:[#allocation10 + $0xc8] sm:$0xff]
    %v543 = vld [vmem:[#allocation10 + $0xd0] sm:$0xff]
    %v544 = vld [vmem:[#allocation10 + $0xd8] sm:$0xff]
    %v545 = vld [vmem:[#allocation10 + $0xe0] sm:$0xff]
    %v546 = vld [vmem:[#allocation10 + $0xe8] sm:$0xff]
    %v547 = vld [vmem:[#allocation10 + $0xf0] sm:$0xff]
    %v548 = vld [vmem:[#allocation10 + $0xf8] sm:$0xff]
    %v549 = vld [vmem:[#allocation10 + $0x100] sm:$0xff]
    %v550 = vld [vmem:[#allocation10 + $0x108] sm:$0xff]
    %v551 = vld [vmem:[#allocation10 + $0x110] sm:$0xff]
    %v552 = vld [vmem:[#allocation10 + $0x118] sm:$0xff]
    %v553 = vld [vmem:[#allocation10 + $0x120] sm:$0xff]
    %v554 = vld [vmem:[#allocation10 + $0x128] sm:$0xff]
    %v555 = vld [vmem:[#allocation10 + $0x130] sm:$0xff]
    %v556 = vld [vmem:[#allocation10 + $0x138] sm:$0xff]
    %v557 = vld [vmem:[#allocation10 + $0x140] sm:$0xff]
    %v558 = vld [vmem:[#allocation10 + $0x148] sm:$0xff]
    %v559 = vld [vmem:[#allocation10 + $0x150] sm:$0xff]
    %v560 = vld [vmem:[#allocation10 + $0x158] sm:$0xff]
    %v561 = vld [vmem:[#allocation10 + $0x160] sm:$0xff]
    %v562 = vld [vmem:[#allocation10 + $0x168] sm:$0xff]
    %v563 = vld [vmem:[#allocation10 + $0x170] sm:$0xff]
    %v564 = vld [vmem:[#allocation10 + $0x178] sm:$0xff]
    %v565 = vld [vmem:[#allocation10 + $0x180] sm:$0xff]
    %v566 = vld [vmem:[#allocation10 + $0x188] sm:$0xff]
    %v567 = vld [vmem:[#allocation10 + $0x190] sm:$0xff]
    %v568 = vld [vmem:[#allocation10 + $0x198] sm:$0xff]
    %v569 = vld [vmem:[#allocation10 + $0x1a0] sm:$0xff]
    %v570 = vld [vmem:[#allocation10 + $0x1a8] sm:$0xff]
    %v571 = vld [vmem:[#allocation10 + $0x1b0] sm:$0xff]
    %v572 = vld [vmem:[#allocation10 + $0x1b8] sm:$0xff]
    %v573 = vld [vmem:[#allocation10 + $0x1c0] sm:$0xff]
    %v574 = vld [vmem:[#allocation10 + $0x1c8] sm:$0xff]
    %v575 = vld [vmem:[#allocation10 + $0x1d0] sm:$0xff]
    %v576 = vld [vmem:[#allocation10 + $0x1d8] sm:$0xff]
    %v577 = vld [vmem:[#allocation10 + $0x1e0] sm:$0xff]
    %v578 = vld [vmem:[#allocation10 + $0x1e8] sm:$0xff]
    %v579 = vld [vmem:[#allocation10 + $0x1f0] sm:$0xff]
    %v580 = vld [vmem:[#allocation10 + $0x1f8] sm:$0xff]
    %v581 = vld [vmem:[#allocation10 + $0x200] sm:$0xff]
    %v582 = vld [vmem:[#allocation10 + $0x208] sm:$0xff]
    %v583 = vld [vmem:[#allocation10 + $0x210] sm:$0xff]
    %v584 = vld [vmem:[#allocation10 + $0x218] sm:$0xff]
    %v585 = vld [vmem:[#allocation10 + $0x220] sm:$0xff]
    %v586 = vld [vmem:[#allocation10 + $0x228] sm:$0xff]
    %v587 = vld [vmem:[#allocation10 + $0x230] sm:$0xff]
    %v588 = vld [vmem:[#allocation10 + $0x238] sm:$0xff]
    %v589 = vld [vmem:[#allocation10 + $0x240] sm:$0xff]
    %v590 = vld [vmem:[#allocation10 + $0x248] sm:$0xff]
    %v591 = vld [vmem:[#allocation10 + $0x250] sm:$0xff]
    %v592 = vld [vmem:[#allocation10 + $0x258] sm:$0xff]
    %v593 = vld [vmem:[#allocation10 + $0x260] sm:$0xff]
    %v594 = vld [vmem:[#allocation10 + $0x268] sm:$0xff]
    %v595 = vld [vmem:[#allocation10 + $0x270] sm:$0xff]
    %v596 = vld [vmem:[#allocation10 + $0x278] sm:$0xff]
    %v597 = vld [vmem:[#allocation10 + $0x280] sm:$0xff]
    %v598 = vld [vmem:[#allocation10 + $0x288] sm:$0xff]
    %v599 = vld [vmem:[#allocation10 + $0x290] sm:$0xff]
    %v600 = vld [vmem:[#allocation10 + $0x298] sm:$0xff]
    %v601 = vld [vmem:[#allocation10 + $0x2a0] sm:$0xff]
    %v602 = vld [vmem:[#allocation10 + $0x2a8] sm:$0xff]
    %v603 = vld [vmem:[#allocation10 + $0x2b0] sm:$0xff]
    %v604 = vld [vmem:[#allocation10 + $0x2b8] sm:$0xff]
    %v605 = vld [vmem:[#allocation10 + $0x2c0] sm:$0xff]
    %v606 = vld [vmem:[#allocation10 + $0x2c8] sm:$0xff]
    %v607 = vld [vmem:[#allocation10 + $0x2d0] sm:$0xff]
    %v608 = vld [vmem:[#allocation10 + $0x2d8] sm:$0xff]
    %v609 = vld [vmem:[#allocation10 + $0x2e0] sm:$0xff]
    %v610 = vld [vmem:[#allocation10 + $0x2e8] sm:$0xff]
    %v611 = vld [vmem:[#allocation10 + $0x2f0] sm:$0xff]
    %v612 = vld [vmem:[#allocation10 + $0x2f8] sm:$0xff]
    %v613 = vld [vmem:[#allocation10 + $0x300] sm:$0xff]
    %v614 = vld [vmem:[#allocation10 + $0x308] sm:$0xff]
    %v615 = vld [vmem:[#allocation10 + $0x310] sm:$0xff]
    %v616 = vld [vmem:[#allocation10 + $0x318] sm:$0xff]
    %v617 = vld [vmem:[#allocation10 + $0x320] sm:$0xff]
    %v618 = vld [vmem:[#allocation10 + $0x328] sm:$0xff]
    %v619 = vld [vmem:[#allocation10 + $0x330] sm:$0xff]
    %v620 = vld [vmem:[#allocation10 + $0x338] sm:$0xff]
    %v621 = vld [vmem:[#allocation10 + $0x340] sm:$0xff]
    %v622 = vld [vmem:[#allocation10 + $0x348] sm:$0xff]
    %v623 = vld [vmem:[#allocation10 + $0x350] sm:$0xff]
    %v624 = vld [vmem:[#allocation10 + $0x358] sm:$0xff]
    %v625 = vld [vmem:[#allocation10 + $0x360] sm:$0xff]
    %v626 = vld [vmem:[#allocation10 + $0x368] sm:$0xff]
    %v627 = vld [vmem:[#allocation10 + $0x370] sm:$0xff]
    %v628 = vld [vmem:[#allocation10 + $0x378] sm:$0xff]
    %v629 = vld [vmem:[#allocation10 + $0x380] sm:$0xff]
    %v630 = vld [vmem:[#allocation10 + $0x388] sm:$0xff]
    %v631 = vld [vmem:[#allocation10 + $0x390] sm:$0xff]
    %v632 = vld [vmem:[#allocation10 + $0x398] sm:$0xff]
    %v633 = vld [vmem:[#allocation10 + $0x3a0] sm:$0xff]
    %v634 = vld [vmem:[#allocation10 + $0x3a8] sm:$0xff]
    %v635 = vld [vmem:[#allocation10 + $0x3b0] sm:$0xff]
    %v636 = vld [vmem:[#allocation10 + $0x3b8] sm:$0xff]
    %v637 = vld [vmem:[#allocation10 + $0x3c0] sm:$0xff]
    %v638 = vld [vmem:[#allocation10 + $0x3c8] sm:$0xff]
    %v639 = vld [vmem:[#allocation10 + $0x3d0] sm:$0xff]
    %v640 = vld [vmem:[#allocation10 + $0x3d8] sm:$0xff]
    %v641 = vld [vmem:[#allocation10 + $0x3e0] sm:$0xff]
    %v642 = vld [vmem:[#allocation10 + $0x3e8] sm:$0xff]
    %v643 = vld [vmem:[#allocation10 + $0x3f0] sm:$0xff]
    %v644 = vld [vmem:[#allocation10 + $0x3f8] sm:$0xff]
    %v645 = vld [vmem:[#allocation10 + $0x400] sm:$0xff]
    %v646 = vld [vmem:[#allocation10 + $0x408] sm:$0xff]
    %v647 = vld [vmem:[#allocation10 + $0x410] sm:$0xff]
    %v648 = vld [vmem:[#allocation10 + $0x418] sm:$0xff]
    %v649 = vld [vmem:[#allocation10 + $0x420] sm:$0xff]
    %v650 = vld [vmem:[#allocation10 + $0x428] sm:$0xff]
    %v651 = vld [vmem:[#allocation10 + $0x430] sm:$0xff]
    %v652 = vld [vmem:[#allocation10 + $0x438] sm:$0xff]
    %v653 = vld [vmem:[#allocation10 + $0x440] sm:$0xff]
    %v654 = vld [vmem:[#allocation10 + $0x448] sm:$0xff]
    %v655 = vld [vmem:[#allocation10 + $0x450] sm:$0xff]
    %v656 = vld [vmem:[#allocation10 + $0x458] sm:$0xff]
    %v657 = vld [vmem:[#allocation10 + $0x460] sm:$0xff]
    %v658 = vld [vmem:[#allocation10 + $0x468] sm:$0xff]
    %v659 = vld [vmem:[#allocation10 + $0x470] sm:$0xff]
    %v660 = vld [vmem:[#allocation10 + $0x478] sm:$0xff]
    %v661 = vld [vmem:[#allocation10 + $0x480] sm:$0xff]
    %v662 = vld [vmem:[#allocation10 + $0x488] sm:$0xff]
    %v663 = vld [vmem:[#allocation10 + $0x490] sm:$0xff]
    %v664 = vld [vmem:[#allocation10 + $0x498] sm:$0xff]
    %v665 = vld [vmem:[#allocation10 + $0x4a0] sm:$0xff]
    %v666 = vld [vmem:[#allocation10 + $0x4a8] sm:$0xff]
    %v667 = vld [vmem:[#allocation10 + $0x4b0] sm:$0xff]
    %v668 = vld [vmem:[#allocation10 + $0x4b8] sm:$0xff]
    %v669 = vld [vmem:[#allocation10 + $0x4c0] sm:$0xff]
    %v670 = vld [vmem:[#allocation10 + $0x4c8] sm:$0xff]
    %v671 = vld [vmem:[#allocation10 + $0x4d0] sm:$0xff]
    %v672 = vld [vmem:[#allocation10 + $0x4d8] sm:$0xff]
    %v673 = vld [vmem:[#allocation10 + $0x4e0] sm:$0xff]
    %v674 = vld [vmem:[#allocation10 + $0x4e8] sm:$0xff]
    %v675 = vld [vmem:[#allocation10 + $0x4f0] sm:$0xff]
    %v676 = vld [vmem:[#allocation10 + $0x4f8] sm:$0xff]
    %v677 = vld [vmem:[#allocation10 + $0x500] sm:$0xff]
    %v678 = vld [vmem:[#allocation10 + $0x508] sm:$0xff]
    %v679 = vld [vmem:[#allocation10 + $0x510] sm:$0xff]
    %v680 = vld [vmem:[#allocation10 + $0x518] sm:$0xff]
    %v681 = vld [vmem:[#allocation10 + $0x520] sm:$0xff]
    %v682 = vld [vmem:[#allocation10 + $0x528] sm:$0xff]
    %v683 = vld [vmem:[#allocation10 + $0x530] sm:$0xff]
    %v684 = vld [vmem:[#allocation10 + $0x538] sm:$0xff]
    %v685 = vld [vmem:[#allocation10 + $0x540] sm:$0xff]
    %v686 = vld [vmem:[#allocation10 + $0x548] sm:$0xff]
    %v687 = vld [vmem:[#allocation10 + $0x550] sm:$0xff]
    %v688 = vld [vmem:[#allocation10 + $0x558] sm:$0xff]
    %v689 = vld [vmem:[#allocation10 + $0x560] sm:$0xff]
    %v690 = vld [vmem:[#allocation10 + $0x568] sm:$0xff]
    %v691 = vld [vmem:[#allocation10 + $0x570] sm:$0xff]
    %v692 = vld [vmem:[#allocation10 + $0x578] sm:$0xff]
    %v693 = vld [vmem:[#allocation10 + $0x580] sm:$0xff]
    %v694 = vld [vmem:[#allocation10 + $0x588] sm:$0xff]
    %v695 = vld [vmem:[#allocation10 + $0x590] sm:$0xff]
    %v696 = vld [vmem:[#allocation10 + $0x598] sm:$0xff]
    %v697 = vld [vmem:[#allocation10 + $0x5a0] sm:$0xff]
    %v698 = vld [vmem:[#allocation10 + $0x5a8] sm:$0xff]
    %v699 = vld [vmem:[#allocation10 + $0x5b0] sm:$0xff]
    %v700 = vld [vmem:[#allocation10 + $0x5b8] sm:$0xff]
    %v701 = vld [vmem:[#allocation10 + $0x5c0] sm:$0xff]
    %v702 = vld [vmem:[#allocation10 + $0x5c8] sm:$0xff]
    %v703 = vld [vmem:[#allocation10 + $0x5d0] sm:$0xff]
    %v704 = vld [vmem:[#allocation10 + $0x5d8] sm:$0xff]
    %v705 = vld [vmem:[#allocation10 + $0x5e0] sm:$0xff]
    %v706 = vld [vmem:[#allocation10 + $0x5e8] sm:$0xff]
    %v707 = vld [vmem:[#allocation10 + $0x5f0] sm:$0xff]
    %v708 = vld [vmem:[#allocation10 + $0x5f8] sm:$0xff]
    %v709 = vld [vmem:[#allocation10 + $0x600] sm:$0xff]
    %v710 = vld [vmem:[#allocation10 + $0x608] sm:$0xff]
    %v711 = vld [vmem:[#allocation10 + $0x610] sm:$0xff]
    %v712 = vld [vmem:[#allocation10 + $0x618] sm:$0xff]
    %v713 = vld [vmem:[#allocation10 + $0x620] sm:$0xff]
    %v714 = vld [vmem:[#allocation10 + $0x628] sm:$0xff]
    %v715 = vld [vmem:[#allocation10 + $0x630] sm:$0xff]
    %v716 = vld [vmem:[#allocation10 + $0x638] sm:$0xff]
    %v717 = vld [vmem:[#allocation10 + $0x640] sm:$0xff]
    %v718 = vld [vmem:[#allocation10 + $0x648] sm:$0xff]
    %v719 = vld [vmem:[#allocation10 + $0x650] sm:$0xff]
    %v720 = vld [vmem:[#allocation10 + $0x658] sm:$0xff]
    %v721 = vld [vmem:[#allocation10 + $0x660] sm:$0xff]
    %v722 = vld [vmem:[#allocation10 + $0x668] sm:$0xff]
    %v723 = vld [vmem:[#allocation10 + $0x670] sm:$0xff]
    %v724 = vld [vmem:[#allocation10 + $0x678] sm:$0xff]
    %v725 = vld [vmem:[#allocation10 + $0x680] sm:$0xff]
    %v726 = vld [vmem:[#allocation10 + $0x688] sm:$0xff]
    %v727 = vld [vmem:[#allocation10 + $0x690] sm:$0xff]
    %v728 = vld [vmem:[#allocation10 + $0x698] sm:$0xff]
    %v729 = vld [vmem:[#allocation10 + $0x6a0] sm:$0xff]
    %v730 = vld [vmem:[#allocation10 + $0x6a8] sm:$0xff]
    %v731 = vld [vmem:[#allocation10 + $0x6b0] sm:$0xff]
    %v732 = vld [vmem:[#allocation10 + $0x6b8] sm:$0xff]
    %v733 = vld [vmem:[#allocation10 + $0x6c0] sm:$0xff]
    %v734 = vld [vmem:[#allocation10 + $0x6c8] sm:$0xff]
    %v735 = vld [vmem:[#allocation10 + $0x6d0] sm:$0xff]
    %v736 = vld [vmem:[#allocation10 + $0x6d8] sm:$0xff]
    %v737 = vld [vmem:[#allocation10 + $0x6e0] sm:$0xff]
    %v738 = vld [vmem:[#allocation10 + $0x6e8] sm:$0xff]
    %v739 = vld [vmem:[#allocation10 + $0x6f0] sm:$0xff]
    %v740 = vld [vmem:[#allocation10 + $0x6f8] sm:$0xff]
    %v741 = vld [vmem:[#allocation10 + $0x700] sm:$0xff]
    %v742 = vld [vmem:[#allocation10 + $0x708] sm:$0xff]
    %v743 = vld [vmem:[#allocation10 + $0x710] sm:$0xff]
    %v744 = vld [vmem:[#allocation10 + $0x718] sm:$0xff]
    %v745 = vld [vmem:[#allocation10 + $0x720] sm:$0xff]
    %v746 = vld [vmem:[#allocation10 + $0x728] sm:$0xff]
    %v747 = vld [vmem:[#allocation10 + $0x730] sm:$0xff]
    %v748 = vld [vmem:[#allocation10 + $0x738] sm:$0xff]
    %v749 = vld [vmem:[#allocation10 + $0x740] sm:$0xff]
    %v750 = vld [vmem:[#allocation10 + $0x748] sm:$0xff]
    %v751 = vld [vmem:[#allocation10 + $0x750] sm:$0xff]
    %v752 = vld [vmem:[#allocation10 + $0x758] sm:$0xff]
    %v753 = vld [vmem:[#allocation10 + $0x760] sm:$0xff]
    %v754 = vld [vmem:[#allocation10 + $0x768] sm:$0xff]
    %v755 = vld [vmem:[#allocation10 + $0x770] sm:$0xff]
    %v756 = vld [vmem:[#allocation10 + $0x778] sm:$0xff]
    %v757 = vld [vmem:[#allocation10 + $0x780] sm:$0xff]
    %v758 = vld [vmem:[#allocation10 + $0x788] sm:$0xff]
    %v759 = vld [vmem:[#allocation10 + $0x790] sm:$0xff]
    %v760 = vld [vmem:[#allocation10 + $0x798] sm:$0xff]
    %v761 = vld [vmem:[#allocation10 + $0x7a0] sm:$0xff]
    %v762 = vld [vmem:[#allocation10 + $0x7a8] sm:$0xff]
    %v763 = vld [vmem:[#allocation10 + $0x7b0] sm:$0xff]
    %v764 = vld [vmem:[#allocation10 + $0x7b8] sm:$0xff]
    %v765 = vld [vmem:[#allocation10 + $0x7c0] sm:$0xff]
    %v766 = vld [vmem:[#allocation10 + $0x7c8] sm:$0xff]
    %v767 = vld [vmem:[#allocation10 + $0x7d0] sm:$0xff]
    %v768 = vld [vmem:[#allocation10 + $0x7d8] sm:$0xff]
    %v769 = vld [vmem:[#allocation10 + $0x7e0] sm:$0xff]
    %v770 = vld [vmem:[#allocation10 + $0x7e8] sm:$0xff]
    %v771 = vld [vmem:[#allocation10 + $0x7f0] sm:$0xff]
    %v772 = vld [vmem:[#allocation10 + $0x7f8] sm:$0xff]
    %v773 = vld [vmem:[#allocation11] sm:$0xff]
    %v775 = vperm.slane %v773, 0
    %v776 = vperm.slane %v773, 1
    %v777 = vperm.slane %v773, 2
    %v778 = vperm.slane %v773, 3
    %v779 = vperm.slane %v773, 4
    %v780 = vperm.slane %v773, 5
    %v781 = vperm.slane %v773, 6
    %v782 = vperm.slane %v773, 7
    %791 = vmatpush.msra.mxu0 %v637
    %792 = vmatpush.msra.mxu0 %v629
    %793 = vmatpush.msra.mxu0 %v621
    %794 = vmatpush.msra.mxu0 %v613
    %795 = vmatpush.msra.mxu0 %v605
    %796 = vmatpush.msra.mxu0 %v597
    %797 = vmatpush.msra.mxu0 %v589
    %798 = vmatpush.msra.mxu0 %v581
    %799 = vmatpush.msra.mxu0 %v573
    %800 = vmatpush.msra.mxu0 %v565
    %801 = vmatpush.msra.mxu0 %v557
    %802 = vmatpush.msra.mxu0 %v549
    %803 = vmatpush.msra.mxu0 %v541
    %804 = vmatpush.msra.mxu0 %v533
    %805 = vmatpush.msra.mxu0 %v525
    %806 = vmatpush.msra.mxu0 %v517
    %807 = vmatmul.f32.gmra.mxu0 %v513
    %v808 = vpop.f32.mrf.mxu0
    %v809 = vadd.f32 %v775, %v808
    %810 = vmatmul.f32.gmra.mxu0 %v515
    %v811 = vpop.f32.mrf.mxu0
    %v812 = vadd.f32 %v775, %v811
    %813 = vdwg.mxu0
    %814 = vmatpush.msra.mxu0 %v765
    %815 = vmatpush.msra.mxu0 %v757
    %816 = vmatpush.msra.mxu0 %v749
    %817 = vmatpush.msra.mxu0 %v741
    %818 = vmatpush.msra.mxu0 %v733
    %819 = vmatpush.msra.mxu0 %v725
    %820 = vmatpush.msra.mxu0 %v717
    %821 = vmatpush.msra.mxu0 %v709
    %822 = vmatpush.msra.mxu0 %v701
    %823 = vmatpush.msra.mxu0 %v693
    %824 = vmatpush.msra.mxu0 %v685
    %825 = vmatpush.msra.mxu0 %v677
    %826 = vmatpush.msra.mxu0 %v669
    %827 = vmatpush.msra.mxu0 %v661
    %828 = vmatpush.msra.mxu0 %v653
    %829 = vmatpush.msra.mxu0 %v645
    %830 = vmatmul.f32.gmra.mxu0 %v514
    %v831 = vpop.f32.mrf.mxu0
    %v832 = vadd.f32 %v809, %v831
    %833 = vmatmul.f32.gmra.mxu0 %v516
    %v834 = vpop.f32.mrf.mxu0
    %v835 = vadd.f32 %v812, %v834
    %836 = vdwg.mxu0
    %837 = vmatpush.msra.mxu0 %v638
    %838 = vmatpush.msra.mxu0 %v630
    %839 = vmatpush.msra.mxu0 %v622
    %840 = vmatpush.msra.mxu0 %v614
    %841 = vmatpush.msra.mxu0 %v606
    %842 = vmatpush.msra.mxu0 %v598
    %843 = vmatpush.msra.mxu0 %v590
    %844 = vmatpush.msra.mxu0 %v582
    %845 = vmatpush.msra.mxu0 %v574
    %846 = vmatpush.msra.mxu0 %v566
    %847 = vmatpush.msra.mxu0 %v558
    %848 = vmatpush.msra.mxu0 %v550
    %849 = vmatpush.msra.mxu0 %v542
    %850 = vmatpush.msra.mxu0 %v534
    %851 = vmatpush.msra.mxu0 %v526
    %852 = vmatpush.msra.mxu0 %v518
    %853 = vmatmul.f32.gmra.mxu0 %v513
    %v854 = vpop.f32.mrf.mxu0
    %v855 = vadd.f32 %v776, %v854
    %856 = vmatmul.f32.gmra.mxu0 %v515
    %v857 = vpop.f32.mrf.mxu0
    %v858 = vadd.f32 %v776, %v857
    %859 = vdwg.mxu0
    %860 = vmatpush.msra.mxu0 %v766
    %861 = vmatpush.msra.mxu0 %v758
    %862 = vmatpush.msra.mxu0 %v750
    %863 = vmatpush.msra.mxu0 %v742
    %864 = vmatpush.msra.mxu0 %v734
    %865 = vmatpush.msra.mxu0 %v726
    %866 = vmatpush.msra.mxu0 %v718
    %867 = vmatpush.msra.mxu0 %v710
    %868 = vmatpush.msra.mxu0 %v702
    %869 = vmatpush.msra.mxu0 %v694
    %870 = vmatpush.msra.mxu0 %v686
    %871 = vmatpush.msra.mxu0 %v678
    %872 = vmatpush.msra.mxu0 %v670
    %873 = vmatpush.msra.mxu0 %v662
    %874 = vmatpush.msra.mxu0 %v654
    %875 = vmatpush.msra.mxu0 %v646
    %876 = vmatmul.f32.gmra.mxu0 %v514
    %v877 = vpop.f32.mrf.mxu0
    %v878 = vadd.f32 %v855, %v877
    %879 = vmatmul.f32.gmra.mxu0 %v516
    %v880 = vpop.f32.mrf.mxu0
    %v881 = vadd.f32 %v858, %v880
    %882 = vdwg.mxu0
    %883 = vmatpush.msra.mxu0 %v639
    %884 = vmatpush.msra.mxu0 %v631
    %885 = vmatpush.msra.mxu0 %v623
    %886 = vmatpush.msra.mxu0 %v615
    %887 = vmatpush.msra.mxu0 %v607
    %888 = vmatpush.msra.mxu0 %v599
    %889 = vmatpush.msra.mxu0 %v591
    %890 = vmatpush.msra.mxu0 %v583
    %891 = vmatpush.msra.mxu0 %v575
    %892 = vmatpush.msra.mxu0 %v567
    %893 = vmatpush.msra.mxu0 %v559
    %894 = vmatpush.msra.mxu0 %v551
    %895 = vmatpush.msra.mxu0 %v543
    %896 = vmatpush.msra.mxu0 %v535
    %897 = vmatpush.msra.mxu0 %v527
    %898 = vmatpush.msra.mxu0 %v519
    %899 = vmatmul.f32.gmra.mxu0 %v513
    %v900 = vpop.f32.mrf.mxu0
    %v901 = vadd.f32 %v777, %v900
    %902 = vmatmul.f32.gmra.mxu0 %v515
    %v903 = vpop.f32.mrf.mxu0
    %v904 = vadd.f32 %v777, %v903
    %905 = vdwg.mxu0
    %906 = vmatpush.msra.mxu0 %v767
    %907 = vmatpush.msra.mxu0 %v759
    %908 = vmatpush.msra.mxu0 %v751
    %909 = vmatpush.msra.mxu0 %v743
    %910 = vmatpush.msra.mxu0 %v735
    %911 = vmatpush.msra.mxu0 %v727
    %912 = vmatpush.msra.mxu0 %v719
    %913 = vmatpush.msra.mxu0 %v711
    %914 = vmatpush.msra.mxu0 %v703
    %915 = vmatpush.msra.mxu0 %v695
    %916 = vmatpush.msra.mxu0 %v687
    %917 = vmatpush.msra.mxu0 %v679
    %918 = vmatpush.msra.mxu0 %v671
    %919 = vmatpush.msra.mxu0 %v663
    %920 = vmatpush.msra.mxu0 %v655
    %921 = vmatpush.msra.mxu0 %v647
    %922 = vmatmul.f32.gmra.mxu0 %v514
    %v923 = vpop.f32.mrf.mxu0
    %v924 = vadd.f32 %v901, %v923
    %925 = vmatmul.f32.gmra.mxu0 %v516
    %v926 = vpop.f32.mrf.mxu0
    %v927 = vadd.f32 %v904, %v926
    %928 = vdwg.mxu0
    %929 = vmatpush.msra.mxu0 %v640
    %930 = vmatpush.msra.mxu0 %v632
    %931 = vmatpush.msra.mxu0 %v624
    %932 = vmatpush.msra.mxu0 %v616
    %933 = vmatpush.msra.mxu0 %v608
    %934 = vmatpush.msra.mxu0 %v600
    %935 = vmatpush.msra.mxu0 %v592
    %936 = vmatpush.msra.mxu0 %v584
    %937 = vmatpush.msra.mxu0 %v576
    %938 = vmatpush.msra.mxu0 %v568
    %939 = vmatpush.msra.mxu0 %v560
    %940 = vmatpush.msra.mxu0 %v552
    %941 = vmatpush.msra.mxu0 %v544
    %942 = vmatpush.msra.mxu0 %v536
    %943 = vmatpush.msra.mxu0 %v528
    %944 = vmatpush.msra.mxu0 %v520
    %945 = vmatmul.f32.gmra.mxu0 %v513
    %v946 = vpop.f32.mrf.mxu0
    %v947 = vadd.f32 %v778, %v946
    %948 = vmatmul.f32.gmra.mxu0 %v515
    %v949 = vpop.f32.mrf.mxu0
    %v950 = vadd.f32 %v778, %v949
    %951 = vdwg.mxu0
    %952 = vmatpush.msra.mxu0 %v768
    %953 = vmatpush.msra.mxu0 %v760
    %954 = vmatpush.msra.mxu0 %v752
    %955 = vmatpush.msra.mxu0 %v744
    %956 = vmatpush.msra.mxu0 %v736
    %957 = vmatpush.msra.mxu0 %v728
    %958 = vmatpush.msra.mxu0 %v720
    %959 = vmatpush.msra.mxu0 %v712
    %960 = vmatpush.msra.mxu0 %v704
    %961 = vmatpush.msra.mxu0 %v696
    %962 = vmatpush.msra.mxu0 %v688
    %963 = vmatpush.msra.mxu0 %v680
    %964 = vmatpush.msra.mxu0 %v672
    %965 = vmatpush.msra.mxu0 %v664
    %966 = vmatpush.msra.mxu0 %v656
    %967 = vmatpush.msra.mxu0 %v648
    %968 = vmatmul.f32.gmra.mxu0 %v514
    %v969 = vpop.f32.mrf.mxu0
    %v970 = vadd.f32 %v947, %v969
    %971 = vmatmul.f32.gmra.mxu0 %v516
    %v972 = vpop.f32.mrf.mxu0
    %v973 = vadd.f32 %v950, %v972
    %974 = vdwg.mxu0
    %975 = vmatpush.msra.mxu0 %v641
    %976 = vmatpush.msra.mxu0 %v633
    %977 = vmatpush.msra.mxu0 %v625
    %978 = vmatpush.msra.mxu0 %v617
    %979 = vmatpush.msra.mxu0 %v609
    %980 = vmatpush.msra.mxu0 %v601
    %981 = vmatpush.msra.mxu0 %v593
    %982 = vmatpush.msra.mxu0 %v585
    %983 = vmatpush.msra.mxu0 %v577
    %984 = vmatpush.msra.mxu0 %v569
    %985 = vmatpush.msra.mxu0 %v561
    %986 = vmatpush.msra.mxu0 %v553
    %987 = vmatpush.msra.mxu0 %v545
    %988 = vmatpush.msra.mxu0 %v537
    %989 = vmatpush.msra.mxu0 %v529
    %990 = vmatpush.msra.mxu0 %v521
    %991 = vmatmul.f32.gmra.mxu0 %v513
    %v992 = vpop.f32.mrf.mxu0
    %v993 = vadd.f32 %v779, %v992
    %994 = vmatmul.f32.gmra.mxu0 %v515
    %v995 = vpop.f32.mrf.mxu0
    %v996 = vadd.f32 %v779, %v995
    %997 = vdwg.mxu0
    %998 = vmatpush.msra.mxu0 %v769
    %999 = vmatpush.msra.mxu0 %v761
    %1000 = vmatpush.msra.mxu0 %v753
    %1001 = vmatpush.msra.mxu0 %v745
    %1002 = vmatpush.msra.mxu0 %v737
    %1003 = vmatpush.msra.mxu0 %v729
    %1004 = vmatpush.msra.mxu0 %v721
    %1005 = vmatpush.msra.mxu0 %v713
    %1006 = vmatpush.msra.mxu0 %v705
    %1007 = vmatpush.msra.mxu0 %v697
    %1008 = vmatpush.msra.mxu0 %v689
    %1009 = vmatpush.msra.mxu0 %v681
    %1010 = vmatpush.msra.mxu0 %v673
    %1011 = vmatpush.msra.mxu0 %v665
    %1012 = vmatpush.msra.mxu0 %v657
    %1013 = vmatpush.msra.mxu0 %v649
    %1014 = vmatmul.f32.gmra.mxu0 %v514
    %v1015 = vpop.f32.mrf.mxu0
    %v1016 = vadd.f32 %v993, %v1015
    %1017 = vmatmul.f32.gmra.mxu0 %v516
    %v1018 = vpop.f32.mrf.mxu0
    %v1019 = vadd.f32 %v996, %v1018
    %1020 = vdwg.mxu0
    %1021 = vmatpush.msra.mxu0 %v642
    %1022 = vmatpush.msra.mxu0 %v634
    %1023 = vmatpush.msra.mxu0 %v626
    %1024 = vmatpush.msra.mxu0 %v618
    %1025 = vmatpush.msra.mxu0 %v610
    %1026 = vmatpush.msra.mxu0 %v602
    %1027 = vmatpush.msra.mxu0 %v594
    %1028 = vmatpush.msra.mxu0 %v586
    %1029 = vmatpush.msra.mxu0 %v578
    %1030 = vmatpush.msra.mxu0 %v570
    %1031 = vmatpush.msra.mxu0 %v562
    %1032 = vmatpush.msra.mxu0 %v554
    %1033 = vmatpush.msra.mxu0 %v546
    %1034 = vmatpush.msra.mxu0 %v538
    %1035 = vmatpush.msra.mxu0 %v530
    %1036 = vmatpush.msra.mxu0 %v522
    %1037 = vmatmul.f32.gmra.mxu0 %v513
    %v1038 = vpop.f32.mrf.mxu0
    %v1039 = vadd.f32 %v780, %v1038
    %1040 = vmatmul.f32.gmra.mxu0 %v515
    %v1041 = vpop.f32.mrf.mxu0
    %v1042 = vadd.f32 %v780, %v1041
    %1043 = vdwg.mxu0
    %1044 = vmatpush.msra.mxu0 %v770
    %1045 = vmatpush.msra.mxu0 %v762
    %1046 = vmatpush.msra.mxu0 %v754
    %1047 = vmatpush.msra.mxu0 %v746
    %1048 = vmatpush.msra.mxu0 %v738
    %1049 = vmatpush.msra.mxu0 %v730
    %1050 = vmatpush.msra.mxu0 %v722
    %1051 = vmatpush.msra.mxu0 %v714
    %1052 = vmatpush.msra.mxu0 %v706
    %1053 = vmatpush.msra.mxu0 %v698
    %1054 = vmatpush.msra.mxu0 %v690
    %1055 = vmatpush.msra.mxu0 %v682
    %1056 = vmatpush.msra.mxu0 %v674
    %1057 = vmatpush.msra.mxu0 %v666
    %1058 = vmatpush.msra.mxu0 %v658
    %1059 = vmatpush.msra.mxu0 %v650
    %1060 = vmatmul.f32.gmra.mxu0 %v514
    %v1061 = vpop.f32.mrf.mxu0
    %v1062 = vadd.f32 %v1039, %v1061
    %1063 = vmatmul.f32.gmra.mxu0 %v516
    %v1064 = vpop.f32.mrf.mxu0
    %v1065 = vadd.f32 %v1042, %v1064
    %1066 = vdwg.mxu0
    %1067 = vmatpush.msra.mxu0 %v643
    %1068 = vmatpush.msra.mxu0 %v635
    %1069 = vmatpush.msra.mxu0 %v627
    %1070 = vmatpush.msra.mxu0 %v619
    %1071 = vmatpush.msra.mxu0 %v611
    %1072 = vmatpush.msra.mxu0 %v603
    %1073 = vmatpush.msra.mxu0 %v595
    %1074 = vmatpush.msra.mxu0 %v587
    %1075 = vmatpush.msra.mxu0 %v579
    %1076 = vmatpush.msra.mxu0 %v571
    %1077 = vmatpush.msra.mxu0 %v563
    %1078 = vmatpush.msra.mxu0 %v555
    %1079 = vmatpush.msra.mxu0 %v547
    %1080 = vmatpush.msra.mxu0 %v539
    %1081 = vmatpush.msra.mxu0 %v531
    %1082 = vmatpush.msra.mxu0 %v523
    %1083 = vmatmul.f32.gmra.mxu0 %v513
    %v1084 = vpop.f32.mrf.mxu0
    %v1085 = vadd.f32 %v781, %v1084
    %1086 = vmatmul.f32.gmra.mxu0 %v515
    %v1087 = vpop.f32.mrf.mxu0
    %v1088 = vadd.f32 %v781, %v1087
    %1089 = vdwg.mxu0
    %1090 = vmatpush.msra.mxu0 %v771
    %1091 = vmatpush.msra.mxu0 %v763
    %1092 = vmatpush.msra.mxu0 %v755
    %1093 = vmatpush.msra.mxu0 %v747
    %1094 = vmatpush.msra.mxu0 %v739
    %1095 = vmatpush.msra.mxu0 %v731
    %1096 = vmatpush.msra.mxu0 %v723
    %1097 = vmatpush.msra.mxu0 %v715
    %1098 = vmatpush.msra.mxu0 %v707
    %1099 = vmatpush.msra.mxu0 %v699
    %1100 = vmatpush.msra.mxu0 %v691
    %1101 = vmatpush.msra.mxu0 %v683
    %1102 = vmatpush.msra.mxu0 %v675
    %1103 = vmatpush.msra.mxu0 %v667
    %1104 = vmatpush.msra.mxu0 %v659
    %1105 = vmatpush.msra.mxu0 %v651
    %1106 = vmatmul.f32.gmra.mxu0 %v514
    %v1107 = vpop.f32.mrf.mxu0
    %v1108 = vadd.f32 %v1085, %v1107
    %1109 = vmatmul.f32.gmra.mxu0 %v516
    %v1110 = vpop.f32.mrf.mxu0
    %v1111 = vadd.f32 %v1088, %v1110
    %1112 = vdwg.mxu0
    %1113 = vmatpush.msra.mxu0 %v644
    %1114 = vmatpush.msra.mxu0 %v636
    %1115 = vmatpush.msra.mxu0 %v628
    %1116 = vmatpush.msra.mxu0 %v620
    %1117 = vmatpush.msra.mxu0 %v612
    %1118 = vmatpush.msra.mxu0 %v604
    %1119 = vmatpush.msra.mxu0 %v596
    %1120 = vmatpush.msra.mxu0 %v588
    %1121 = vmatpush.msra.mxu0 %v580
    %1122 = vmatpush.msra.mxu0 %v572
    %1123 = vmatpush.msra.mxu0 %v564
    %1124 = vmatpush.msra.mxu0 %v556
    %1125 = vmatpush.msra.mxu0 %v548
    %1126 = vmatpush.msra.mxu0 %v540
    %1127 = vmatpush.msra.mxu0 %v532
    %1128 = vmatpush.msra.mxu0 %v524
    %1129 = vmatmul.f32.gmra.mxu0 %v513
    %v1130 = vpop.f32.mrf.mxu0
    %v1131 = vadd.f32 %v782, %v1130
    %1132 = vmatmul.f32.gmra.mxu0 %v515
    %v1133 = vpop.f32.mrf.mxu0
    %v1134 = vadd.f32 %v782, %v1133
    %1135 = vdwg.mxu0
    %1136 = vmatpush.msra.mxu0 %v772
    %1137 = vmatpush.msra.mxu0 %v764
    %1138 = vmatpush.msra.mxu0 %v756
    %1139 = vmatpush.msra.mxu0 %v748
    %1140 = vmatpush.msra.mxu0 %v740
    %1141 = vmatpush.msra.mxu0 %v732
    %1142 = vmatpush.msra.mxu0 %v724
    %1143 = vmatpush.msra.mxu0 %v716
    %1144 = vmatpush.msra.mxu0 %v708
    %1145 = vmatpush.msra.mxu0 %v700
    %1146 = vmatpush.msra.mxu0 %v692
    %1147 = vmatpush.msra.mxu0 %v684
    %1148 = vmatpush.msra.mxu0 %v676
    %1149 = vmatpush.msra.mxu0 %v668
    %1150 = vmatpush.msra.mxu0 %v660
    %1151 = vmatpush.msra.mxu0 %v652
    %1152 = vmatmul.f32.gmra.mxu0 %v514
    %v1153 = vpop.f32.mrf.mxu0
    %v1154 = vadd.f32 %v1131, %v1153
    %1155 = vmatmul.f32.gmra.mxu0 %v516
    %v1156 = vpop.f32.mrf.mxu0
    %v1157 = vadd.f32 %v1134, %v1156
    %1158 = vdwg.mxu0
    %v1159 = vtanh.pop %v832
    %v1160 = vtanh.pop %v878
    %v1161 = vtanh.pop %v924
    %v1162 = vtanh.pop %v970
    %v1163 = vtanh.pop %v1016
    %v1164 = vtanh.pop %v1062
    %v1165 = vtanh.pop %v1108
    %v1166 = vtanh.pop %v1154
    %v1167 = vtanh.pop %v835
    %v1168 = vtanh.pop %v881
    %v1169 = vtanh.pop %v927
    %v1170 = vtanh.pop %v973
    %v1171 = vtanh.pop %v1019
    %v1172 = vtanh.pop %v1065
    %v1173 = vtanh.pop %v1111
    %v1174 = vtanh.pop %v1157
    %1175 = vst [vmem:[#allocation13] sm:$0xff] %v1159
    %1176 = vst [vmem:[#allocation13 + $0x8] sm:$0xff] %v1160
    %1177 = vst [vmem:[#allocation13 + $0x10] sm:$0xff] %v1161
    %1178 = vst [vmem:[#allocation13 + $0x18] sm:$0xff] %v1162
    %1179 = vst [vmem:[#allocation13 + $0x20] sm:$0xff] %v1163
    %1180 = vst [vmem:[#allocation13 + $0x28] sm:$0xff] %v1164
    %1181 = vst [vmem:[#allocation13 + $0x30] sm:$0xff] %v1165
    %1182 = vst [vmem:[#allocation13 + $0x38] sm:$0xff] %v1166
    %1183 = vst [vmem:[#allocation13 + $0x40] sm:$0xff] %v1167
    %1184 = vst [vmem:[#allocation13 + $0x48] sm:$0xff] %v1168
    %1185 = vst [vmem:[#allocation13 + $0x50] sm:$0xff] %v1169
    %1186 = vst [vmem:[#allocation13 + $0x58] sm:$0xff] %v1170
    %1187 = vst [vmem:[#allocation13 + $0x60] sm:$0xff] %v1171
    %1188 = vst [vmem:[#allocation13 + $0x68] sm:$0xff] %v1172
    %1189 = vst [vmem:[#allocation13 + $0x70] sm:$0xff] %v1173
    %1190 = vst [vmem:[#allocation13 + $0x78] sm:$0xff] %v1174
    // Predicated region
    $region54: #{tpu_custom_call.1} parent=1 // pred_check
      _
    $region55: #{tpu_custom_call.1} parent=1 // pred_check_branch
      %1192 = sbr.rel (0) target = $region57
    $region56: #{tpu_custom_call.1} parent=1 // pred_region
      %1194 = vsyncadd [#allocation4], 0
      %s1195 = sshll.u32 [#allocation13], 4
      %s1196 = int_to_ptr.vmem [resolvable:$true] %s1195
      %s1197 = sshll.u32 %s7, 4
      %s1198 = int_to_ptr.hbm [resolvable:$true] %s1197
      %1203 = dma.vmem_to_hbm [thread:$0]  %s1196, 2048, %s1198, [#allocation4], 1024, 1024, 64
    $region57: #{tpu_custom_call.1} parent=1 // pred_fallthru
      _
    // Predicated region
    $region58: #{tpu_custom_call.1} parent=1 // pred_check
      _
    $region59: #{tpu_custom_call.1} parent=1 // pred_check_branch
      %1205 = sbr.rel (0) target = $region61
    $region60: #{tpu_custom_call.1} parent=1 // pred_region
      %1207 = dma.done [#allocation4], 2048
    $region61: #{tpu_custom_call.1} parent=1 // pred_fallthru
      _
    %1208 = vsyncpa [#allocation3], 1
    %1209 = vsyncpa [#allocation6], 1
    %1210 = vsyncpa [#allocation9], 1
    %1211 = vsyncpa [#allocation12], 1
    %1212 = vsyncpa [#allocation4], 1

</llo_original>
